<compile_context>
chip_gen: v7x
topology: tpu7x:2x2x1
jax: 0.10.0
libtpu: 0.0.40
codegen_flags: <defaults>
</compile_context>

<pallas_src>
from functools import partial

import jax
import jax.numpy as jnp
from jax.experimental import pallas as pl
from jax.experimental.pallas import tpu as pltpu


# ----------------------------------------------------------------------------
# Kernels
# ----------------------------------------------------------------------------
def _dups_fused_kernel(x_ref, g_ref, o_ref):
    """Fused 1x1-conv + depth-to-space spread.

    x_ref: (1, Cin, hb, W)   input rows (NCHW block)
    g_ref: (Cin, W, K)       weight-folded spread matrices, K = scale*W*scale*nc
    o_ref: (1, hb, K)        interleaved output rows (flat (a1, w, c2) per row)
    """
    cin = x_ref.shape[1]
    acc = jnp.dot(x_ref[0, 0], g_ref[0], preferred_element_type=jnp.float32)
    for k in range(1, cin):
        acc = acc + jnp.dot(x_ref[0, k], g_ref[k],
                            preferred_element_type=jnp.float32)
    o_ref[0] = acc.astype(o_ref.dtype)


def _conv1x1_mxu_kernel(x_ref, w_ref, o_ref):
    """Fallback channel-major 1x1 conv: (Cout, Cin) @ (Cin, tm)."""
    # TODO(synk): cast to bf16 before the dot (keeping f32 accumulation) when the
    # caller tolerates bf16 I/O — ~2x on the memory-bound roofline.
    o_ref[0] = jnp.dot(w_ref[...], x_ref[0],
                       preferred_element_type=jnp.float32).astype(o_ref.dtype)


# ----------------------------------------------------------------------------
# Verbatim PyTorch permute/view chain (used by the fallback path and the ref)
# ----------------------------------------------------------------------------
def _verbatim_shuffle(y_nchw, scale):
    N, C, H, W = y_nchw.shape
    p1 = jnp.transpose(y_nchw, (0, 3, 2, 1))                      # permute(0,3,2,1)
    v2 = p1.reshape(N, W, H * scale, C // scale)                  # view
    p3 = jnp.transpose(v2, (0, 2, 1, 3))                          # permute(0,2,1,3)
    v4 = p3.reshape(N, W * scale, H * scale, C // (scale * scale))  # view
    return jnp.transpose(v4, (0, 3, 1, 2))                        # permute(0,3,1,2)


# ----------------------------------------------------------------------------
# Fused path
# ----------------------------------------------------------------------------
def _fused_dupsample(x_nchw, w_oc, scale, num_class, vmem_cap):
    N, Cin, H, W = x_nchw.shape
    C1 = scale * num_class
    K = scale * W * C1                       # = W * Cout, the interleaved row width
    dt = x_nchw.dtype
    itemsize = jnp.dtype(dt).itemsize

    # Fold the 1x1-conv weight and the (w, c2) lane interleave of the
    # depth-to-space shuffle into one constant spread matrix per input channel:
    #   G[k, w, a1*(W*C1) + w*C1 + c2] = weight[a1*C1 + c2, k]
    eye_w = jnp.eye(W, dtype=dt)
    w3 = w_oc.reshape(scale, C1, Cin).astype(dt)
    g = jnp.einsum("ack,wv->kwavc", w3, eye_w).reshape(Cin, W, K)
    g_bytes = Cin * W * K * itemsize

    # Generation-aware working-set budget (~29 MiB on v7x, ~58 MiB on v5e/v6e).
    budget = max(4 << 20, int(vmem_cap * 0.45))
    row_bytes = 2 * (Cin * W + K) * itemsize          # double-buffered in + out
    avail = max(row_bytes, budget - 2 * g_bytes)
    max_rows = max(1, avail // row_bytes)

    if max_rows >= H or H <= 8:
        hb = H
    else:
        hb = min(H, max(8, (max_rows // 8) * 8))
    # Keep >= 4 grid programs so both v7x TensorCores get work.
    if N * pl.cdiv(H, hb) < 4 and hb > 8 and H >= 16:
        hb = max(8, ((hb // 2) // 8) * 8)

    grid = (N, pl.cdiv(H, hb))

    need = 2 * (Cin * hb * W + hb * K) * itemsize + 2 * g_bytes + (1 << 20)
    vmem_limit = int(min(max(2 * need, 16 << 20), int(vmem_cap * 0.7)))

    cost = pl.CostEstimate(
        flops=int(2 * N * H * W * Cin * K),   # MXU flops incl. the folded spread
        transcendentals=0,
        bytes_accessed=int(itemsize * (N * Cin * H * W + N * H * K + Cin * W * K)),
    )

    a = pl.pallas_call(
        _dups_fused_kernel,
        out_shape=jax.ShapeDtypeStruct((N, H, K), dt),
        grid_spec=pltpu.PrefetchScalarGridSpec(
            num_scalar_prefetch=0,
            grid=grid,
            in_specs=[
                # Row block of the NCHW input (no wrapper transpose / pad).
                pl.BlockSpec((1, Cin, hb, W), lambda n, i: (n, 0, i, 0)),
                # Constant index_map -> spread matrices stay VMEM-resident.
                pl.BlockSpec((Cin, W, K), lambda n, i: (0, 0, 0)),
            ],
            out_specs=pl.BlockSpec((1, hb, K), lambda n, i: (n, i, 0)),
        ),
        compiler_params=pltpu.CompilerParams(
            dimension_semantics=("parallel", "parallel"),
            vmem_limit_bytes=vmem_limit,
        ),
        cost_estimate=cost,
    )(x_nchw, g)

    # `a`'s per-batch flat order is (h, scale_h, w, scale_w*num_class) — exactly
    # the memory the PyTorch code reinterprets in its final view, so the
    # remaining verbatim ops are a FREE reshape plus a permute that is a bitcast
    # whenever num_class == 1 (the module default).
    v4 = a.reshape(N, W * scale, H * scale, num_class)
    return jnp.transpose(v4, (0, 3, 1, 2))


# ----------------------------------------------------------------------------
# Fallback path (large Cin / large W): lane-dense channel-major conv kernel +
# verbatim XLA shuffle (one extra HBM round trip, but memory-optimal matmul).
# ----------------------------------------------------------------------------
def _unfused_dupsample(x_nchw, w_oc, scale, vmem_cap):
    N, Cin, H, W = x_nchw.shape
    Cout = w_oc.shape[0]
    M = H * W
    dt = x_nchw.dtype
    itemsize = jnp.dtype(dt).itemsize
    x_ncm = x_nchw.reshape(N, Cin, M)        # free reshape of NCHW

    budget = max(4 << 20, int(vmem_cap * 0.45))
    col_bytes = 2 * (Cin + Cout) * itemsize
    if M < 128:
        tm = M                                # block == full dim: always legal
    else:
        tm = (budget // col_bytes) // 128 * 128
        tm = max(128, min(tm, 32768, (M // 128) * 128))
        # Keep >= 4 grid programs for the 2-TC v7x layout.
        while N * pl.cdiv(M, tm) < 4 and tm >= 256:
            tm = max(128, (tm // 2) // 128 * 128)

    grid = (N, pl.cdiv(M, tm))                # ragged edge masked; no jnp.pad/slice
    need = 2 * tm * (Cin + Cout) * itemsize + 2 * Cout * Cin * itemsize + (1 << 20)
    vmem_limit = int(min(max(2 * need, 16 << 20), int(vmem_cap * 0.7)))

    cost = pl.CostEstimate(
        flops=int(2 * N * M * Cin * Cout),
        transcendentals=0,
        bytes_accessed=int(itemsize * (N * M * (Cin + Cout) + Cin * Cout)),
    )

    y = pl.pallas_call(
        _conv1x1_mxu_kernel,
        out_shape=jax.ShapeDtypeStruct((N, Cout, M), dt),
        grid_spec=pltpu.PrefetchScalarGridSpec(
            num_scalar_prefetch=0,
            grid=grid,
            in_specs=[
                pl.BlockSpec((1, Cin, tm), lambda n, i: (n, 0, i)),
                pl.BlockSpec((Cout, Cin), lambda n, i: (0, 0)),
            ],
            out_specs=pl.BlockSpec((1, Cout, tm), lambda n, i: (n, 0, i)),
        ),
        compiler_params=pltpu.CompilerParams(
            dimension_semantics=("parallel", "parallel"),
            vmem_limit_bytes=vmem_limit,
        ),
        cost_estimate=cost,
    )(x_ncm, w_oc)

    return _verbatim_shuffle(y.reshape(N, Cout, H, W), scale)


# ----------------------------------------------------------------------------
# Public forward
# ----------------------------------------------------------------------------
@partial(jax.jit, static_argnames=("scale", "force_unfused"))
def dupsampling_forward(x_nchw, conv_w_weight, scale, force_unfused=False):
    """DUpsampling.forward: 1x1 conv (conv_w, no bias) + verbatim view shuffle.

    x_nchw:        (N, inplanes, H, W)
    conv_w_weight: (num_class*scale*scale, inplanes, 1, 1)  (PyTorch OIHW)
    returns:       (N, num_class, W*scale, H*scale)  — PyTorch's exact labeling.
    """
    N, Cin, H, W = x_nchw.shape
    Cout = conv_w_weight.shape[0]
    num_class = Cout // (scale * scale)
    w_oc = conv_w_weight.reshape(Cout, Cin)
    itemsize = jnp.dtype(x_nchw.dtype).itemsize

    try:
        vmem_cap = int(getattr(pltpu.get_tpu_info(), "vmem_capacity_bytes",
                               64 << 20))
    except Exception:
        vmem_cap = 64 << 20                     # v7x-safe default

    K = scale * W * scale * num_class
    g_bytes = Cin * W * K * itemsize
    budget = max(4 << 20, int(vmem_cap * 0.45))
    # Fused path: single HBM read + write.  Gate on (a) the resident spread
    # matrices fitting comfortably in VMEM and (b) the MXU-flop inflation of the
    # folded spread staying below the memory-bound roofline knee.
    fusable = (
        (2 * g_bytes <= min(12 << 20, budget // 3))
        and Cin <= 16
        and (2 * Cin * Cout * W) <= 160 * (Cin + Cout) * itemsize
    )
    if fusable and not force_unfused:
        return _fused_dupsample(x_nchw, w_oc, scale, num_class, vmem_cap)
    # TODO(synk): for very large Cin / W the fused spread-matmul stops being
    # memory-bound; the fallback does conv-kernel + verbatim XLA shuffle
    # (one extra HBM round trip on the conv output).
    return _unfused_dupsample(x_nchw, w_oc, scale, vmem_cap)


# ----------------------------------------------------------------------------
# Self-test
# ----------------------------------------------------------------------------
if __name__ == "__main__":
    def reference(x, w_oihw, scale):
        w_oc = w_oihw.reshape(w_oihw.shape[0], w_oihw.shape[1])
        y = jnp.einsum("nkhw,ok->nohw", x, w_oc)
        return _verbatim_shuffle(y, scale)

    key = jax.random.PRNGKey(0)
    k1, k2, k3, k4, k5 = jax.random.split(key, 5)

    # --- DUpsampling(inplanes=4, scale=2, num_class=1) on (2, 4, 16, 16) -----
    inplanes, scale, num_class = 4, 2, 1
    N, H, W = 2, 16, 16
    x = jax.random.normal(k1, (N, inplanes, H, W), dtype=jnp.float32)
    w = jax.random.normal(
        k2, (num_class * scale * scale, inplanes, 1, 1), dtype=jnp.float32) * 0.1
    # conv_p exists in __init__ but is never used in forward(); kept for parity.
    _conv_p_weight = jax.random.normal(
        k3, (inplanes, num_class * scale * scale, 1, 1), dtype=jnp.float32) * 0.1
    del _conv_p_weight

    out = jax.block_until_ready(dupsampling_forward(x, w, scale=scale))
    ref = reference(x, w, scale)
    assert out.shape == (N, num_class, W * scale, H * scale), out.shape
    assert float(jnp.max(jnp.abs(out - ref))) < 1e-4

    # --- non-square H != W, num_class > 1: verbatim-semantics check ----------
    inplanes2, scale2, num_class2 = 5, 2, 2
    N2, H2, W2 = 2, 8, 24
    x2 = jax.random.normal(k4, (N2, inplanes2, H2, W2), dtype=jnp.float32)
    w2 = jax.random.normal(
        k5, (num_class2 * scale2 * scale2, inplanes2, 1, 1), dtype=jnp.float32) * 0.1
    out2 = jax.block_until_ready(dupsampling_forward(x2, w2, scale=scale2))
    ref2 = reference(x2, w2, scale2)
    assert out2.shape == (N2, num_class2, W2 * scale2, H2 * scale2), out2.shape
    assert float(jnp.max(jnp.abs(out2 - ref2))) < 1e-4

    # --- forced fallback (large-channel path) on the first config ------------
    out3 = jax.block_until_ready(
        dupsampling_forward(x, w, scale=scale, force_unfused=True))
    assert float(jnp.max(jnp.abs(out3 - ref))) < 1e-4

    print("KERNEL_OK")
</pallas_src>

<mosaic_0001>
module attributes {stable_mosaic.version = 11 : i64} {
  func.func @_dups_fused_kernel(%arg0: i32, %arg1: i32, %arg2: memref<1x4x8x16xf32, #tpu.memory_space<vmem>>, %arg3: memref<4x16x64xf32, #tpu.memory_space<vmem>>, %arg4: memref<1x8x64xf32, #tpu.memory_space<vmem>>) attributes {dimension_semantics = [#tpu.dimension_semantics<parallel>, #tpu.dimension_semantics<parallel>], iteration_bounds = array<i64: 2, 2>, scalar_prefetch = 0 : i64, scratch_operands = 0 : i64, tpu.core_type = #tpu.core_type<tc>, window_params = [{transform_indices = @transform_0, window_bounds = array<i64: 1, 4, 8, 16>}, {pipeline_mode = #tpu.pipeline_mode<synchronous>, transform_indices = @transform_1, window_bounds = array<i64: 4, 16, 64>}, {transform_indices = @transform_2, window_bounds = array<i64: 1, 8, 64>}]} {
    %c0 = arith.constant 0 : index
    %c0_0 = arith.constant 0 : index
    %c0_1 = arith.constant 0 : index
    %c0_2 = arith.constant 0 : index
    %0 = vector.load %arg2[%c0, %c0_0, %c0_1, %c0_2] : memref<1x4x8x16xf32, #tpu.memory_space<vmem>>, vector<1x1x8x16xf32>
    %1 = vector.shape_cast %0 : vector<1x1x8x16xf32> to vector<8x16xf32>
    %c0_3 = arith.constant 0 : index
    %c0_4 = arith.constant 0 : index
    %c0_5 = arith.constant 0 : index
    %2 = vector.load %arg3[%c0_3, %c0_4, %c0_5] : memref<4x16x64xf32, #tpu.memory_space<vmem>>, vector<1x16x64xf32>
    %3 = vector.shape_cast %2 : vector<1x16x64xf32> to vector<16x64xf32>
    %cst = arith.constant dense<0.000000e+00> : vector<8x64xf32>
    %4 = tpu.matmul %1, %3, %cst {dimension_numbers = #tpu.dot_dimension_numbers<[1], [0], [0], [1], [0, 0, 1, 1], [], []>} : vector<8x16xf32>, vector<16x64xf32>, vector<8x64xf32> -> vector<8x64xf32>
    %c0_6 = arith.constant 0 : index
    %c1 = arith.constant 1 : index
    %c0_7 = arith.constant 0 : index
    %c0_8 = arith.constant 0 : index
    %5 = vector.load %arg2[%c0_6, %c1, %c0_7, %c0_8] : memref<1x4x8x16xf32, #tpu.memory_space<vmem>>, vector<1x1x8x16xf32>
    %6 = vector.shape_cast %5 : vector<1x1x8x16xf32> to vector<8x16xf32>
    %c1_9 = arith.constant 1 : index
    %c0_10 = arith.constant 0 : index
    %c0_11 = arith.constant 0 : index
    %7 = vector.load %arg3[%c1_9, %c0_10, %c0_11] : memref<4x16x64xf32, #tpu.memory_space<vmem>>, vector<1x16x64xf32>
    %8 = vector.shape_cast %7 : vector<1x16x64xf32> to vector<16x64xf32>
    %cst_12 = arith.constant dense<0.000000e+00> : vector<8x64xf32>
    %9 = tpu.matmul %6, %8, %cst_12 {dimension_numbers = #tpu.dot_dimension_numbers<[1], [0], [0], [1], [0, 0, 1, 1], [], []>} : vector<8x16xf32>, vector<16x64xf32>, vector<8x64xf32> -> vector<8x64xf32>
    %10 = arith.addf %4, %9 : vector<8x64xf32>
    %c0_13 = arith.constant 0 : index
    %c2 = arith.constant 2 : index
    %c0_14 = arith.constant 0 : index
    %c0_15 = arith.constant 0 : index
    %11 = vector.load %arg2[%c0_13, %c2, %c0_14, %c0_15] : memref<1x4x8x16xf32, #tpu.memory_space<vmem>>, vector<1x1x8x16xf32>
    %12 = vector.shape_cast %11 : vector<1x1x8x16xf32> to vector<8x16xf32>
    %c2_16 = arith.constant 2 : index
    %c0_17 = arith.constant 0 : index
    %c0_18 = arith.constant 0 : index
    %13 = vector.load %arg3[%c2_16, %c0_17, %c0_18] : memref<4x16x64xf32, #tpu.memory_space<vmem>>, vector<1x16x64xf32>
    %14 = vector.shape_cast %13 : vector<1x16x64xf32> to vector<16x64xf32>
    %cst_19 = arith.constant dense<0.000000e+00> : vector<8x64xf32>
    %15 = tpu.matmul %12, %14, %cst_19 {dimension_numbers = #tpu.dot_dimension_numbers<[1], [0], [0], [1], [0, 0, 1, 1], [], []>} : vector<8x16xf32>, vector<16x64xf32>, vector<8x64xf32> -> vector<8x64xf32>
    %16 = arith.addf %10, %15 : vector<8x64xf32>
    %c0_20 = arith.constant 0 : index
    %c3 = arith.constant 3 : index
    %c0_21 = arith.constant 0 : index
    %c0_22 = arith.constant 0 : index
    %17 = vector.load %arg2[%c0_20, %c3, %c0_21, %c0_22] : memref<1x4x8x16xf32, #tpu.memory_space<vmem>>, vector<1x1x8x16xf32>
    %18 = vector.shape_cast %17 : vector<1x1x8x16xf32> to vector<8x16xf32>
    %c3_23 = arith.constant 3 : index
    %c0_24 = arith.constant 0 : index
    %c0_25 = arith.constant 0 : index
    %19 = vector.load %arg3[%c3_23, %c0_24, %c0_25] : memref<4x16x64xf32, #tpu.memory_space<vmem>>, vector<1x16x64xf32>
    %20 = vector.shape_cast %19 : vector<1x16x64xf32> to vector<16x64xf32>
    %cst_26 = arith.constant dense<0.000000e+00> : vector<8x64xf32>
    %21 = tpu.matmul %18, %20, %cst_26 {dimension_numbers = #tpu.dot_dimension_numbers<[1], [0], [0], [1], [0, 0, 1, 1], [], []>} : vector<8x16xf32>, vector<16x64xf32>, vector<8x64xf32> -> vector<8x64xf32>
    %22 = arith.addf %16, %21 : vector<8x64xf32>
    %c0_27 = arith.constant 0 : index
    %c0_28 = arith.constant 0 : index
    %c0_29 = arith.constant 0 : index
    %23 = vector.load %arg4[%c0_27, %c0_28, %c0_29] : memref<1x8x64xf32, #tpu.memory_space<vmem>>, vector<1x8x64xf32>
    %24 = vector.shape_cast %23 : vector<1x8x64xf32> to vector<8x64xf32>
    %25 = vector.shape_cast %22 : vector<8x64xf32> to vector<1x8x64xf32>
    tpu.vector_store %arg4[%c0_27, %c0_28, %c0_29], %25 {strides = array<i32>} : memref<1x8x64xf32, #tpu.memory_space<vmem>>, vector<1x8x64xf32>,
    return
  }
  func.func @transform_0(%arg0: i32, %arg1: i32) -> (i32, i32, i32, i32) {
    %c0_i32 = arith.constant 0 : i32
    %c0_i32_0 = arith.constant 0 : i32
    %c0_i32_1 = arith.constant 0 : i32
    return %arg0, %c0_i32, %arg1, %c0_i32_0 : i32, i32, i32, i32
  }
  func.func @transform_1(%arg0: i32, %arg1: i32) -> (i32, i32, i32) {
    %c0_i32 = arith.constant 0 : i32
    %c0_i32_0 = arith.constant 0 : i32
    %c0_i32_1 = arith.constant 0 : i32
    %c0_i32_2 = arith.constant 0 : i32
    return %c0_i32, %c0_i32_0, %c0_i32_1 : i32, i32, i32
  }
  func.func @transform_2(%arg0: i32, %arg1: i32) -> (i32, i32, i32) {
    %c0_i32 = arith.constant 0 : i32
    %c0_i32_0 = arith.constant 0 : i32
    return %arg0, %arg1, %c0_i32 : i32, i32, i32
  }
}

</mosaic_0001>

<llo_original>
// kernel: dupsampling_forward.1
$region0: #{dupsampling_forward.1}
  #allocation0 [shape = 'u32[]', space=smem, size = 0x4, offset = 0x4, fixed_abs, tag = 'smem constant byte address 0x4 - core index']
  #allocation1 [shape = 'u32[144,128]{1,0:T(1,128)}', space=vmem, size = 0x12000, scoped, tag = 'internal scratch']
  %s0 = inlined_call_operand.vmem [shape: f32[2,4,16,16], index: 0, kind: input, shape index: {}]
  %s1 = inlined_call_operand.vmem [shape: f32[4,16,64], index: 1, kind: input, shape index: {}]
  %s2 = inlined_call_operand.vmem [shape: f32[2,16,64], index: 2, kind: output, shape index: {}]
  %s3 = sld [smem:[#allocation0]]
  $region79: #{dupsampling_forward.1} parent=0
    _
  %s5 = ssub.s32 1, %s3
  %s6 = scalar_select 0, %s5, %s3
  $region1: #{dupsampling_forward.1} parent=0
    #allocation2 [shape = 'u8[32768]{0}', space=vmem, size = 0x8000, scoped, tag = 'input window, operand 0']
    loop: start=0, step=1, limit=6
    $region2: #{dupsampling_forward.1} parent=1 // loop_pre_header
      _
    $region3: #{dupsampling_forward.1} parent=1 // loop_header
      %s8 = sphi 0, %s12
      %p9 = scmp.ge.s32.totalorder %s8, 6
      %s15 = sphi 0, %s27
      %s16 = sphi 0, %s23
      %s17 = sphi 0, %s15
      %s18 = sphi 0, %s16
      %s19 = sphi 0, %s17
      %s20 = sphi 0, %s18
      %s32 = sphi 0, %s34
      %s35 = sphi 0, %s32
      %s36 = sphi 0, %s35
      %s52 = sphi 0, %s36
      %s56 = sphi 0, %s56
      %s58 = sphi 0, %s56
      %s59 = sphi 0, %s58
      %s73 = sphi 0, %s59
      %s81 = sphi 0, %s83
      %s84 = sphi 0, %s81
      %s85 = sphi 0, %s84
      %s101 = sphi 0, %s85
    $region4: #{dupsampling_forward.1} parent=1 // loop_header_branch
      %11 = sbr.rel (%p9) target = $region8
    $region5: #{dupsampling_forward.1} parent=1 // loop_body
      %s13 = ssub.s32 %s8, 1
      %s14 = ssub.s32 %s8, 2
      %s21 = sadd.s32 1, %s16
      %p22 = scmp.ge.s32.totalorder %s21, 2
      %s23 = scalar_select %p22, 0, %s21
      %s24 = sadd.s32 1, %s15
      %s25 = scalar_select %p22, %s24, %s15
      %p26 = scmp.ge.s32.totalorder %s25, 2
      %s27 = scalar_select %p26, 0, %s25
      %s28 = ssub.s32 %s15, %s27
      %s29 = ssub.s32 %s16, %s23
      %s30 = sor.u32 %s28, %s29
      %p31 = scmp.eq.s32.totalorder %s30, 0
      %s33 = sadd.s32 %s32, 1
      %s34 = scalar_select %p31, %s32, %s33
      %p37 = pneg %p31
      %p38 = scmp.eq.s32.totalorder %s8, 3
      %p39 = por %p37, %p38
      %p40 = scmp.ne.s32.totalorder %s32, %s35
      %p41 = scmp.eq.s32.totalorder %s8, 0
      %p42 = por %p40, %p41
      %p43 = scmp.ne.s32.totalorder %s32, %s35
      %p44 = scmp.eq.s32.totalorder %s13, 3
      %p45 = por %p43, %p44
      %p46 = scmp.ne.s32.totalorder %s35, %s36
      %p47 = scmp.eq.s32.totalorder %s13, 0
      %p48 = por %p46, %p47
      %p49 = scmp.ne.s32.totalorder %s35, %s36
      %p50 = scmp.eq.s32.totalorder %s14, 3
      %p51 = por %p49, %p50
      %p53 = scmp.ne.s32.totalorder %s36, %s52
      %p54 = scmp.eq.s32.totalorder %s14, 0
      %p55 = por %p53, %p54
      %s57 = sadd.s32 %s56, 1
      %p60 = scmp.eq.s32.totalorder %s8, 3
      %p61 = scmp.ne.s32.totalorder %s56, %s58
      %p62 = scmp.eq.s32.totalorder %s8, 0
      %p63 = por %p61, %p62
      %p64 = scmp.ne.s32.totalorder %s56, %s58
      %p65 = scmp.eq.s32.totalorder %s13, 3
      %p66 = por %p64, %p65
      %p67 = scmp.ne.s32.totalorder %s58, %s59
      %p68 = scmp.eq.s32.totalorder %s13, 0
      %p69 = por %p67, %p68
      %p70 = scmp.ne.s32.totalorder %s58, %s59
      %p71 = scmp.eq.s32.totalorder %s14, 3
      %p72 = por %p70, %p71
      %p74 = scmp.ne.s32.totalorder %s59, %s73
      %p75 = scmp.eq.s32.totalorder %s14, 0
      %p76 = por %p74, %p75
      %s77 = ssub.s32 %s15, %s27
      %s78 = ssub.s32 %s16, %s23
      %s79 = sor.u32 %s77, %s78
      %p80 = scmp.eq.s32.totalorder %s79, 0
      %s82 = sadd.s32 %s81, 1
      %s83 = scalar_select %p80, %s81, %s82
      %p86 = pneg %p80
      %p87 = scmp.eq.s32.totalorder %s8, 3
      %p88 = por %p86, %p87
      %p89 = scmp.ne.s32.totalorder %s81, %s84
      %p90 = scmp.eq.s32.totalorder %s8, 0
      %p91 = por %p89, %p90
      %p92 = scmp.ne.s32.totalorder %s81, %s84
      %p93 = scmp.eq.s32.totalorder %s13, 3
      %p94 = por %p92, %p93
      %p95 = scmp.ne.s32.totalorder %s84, %s85
      %p96 = scmp.eq.s32.totalorder %s13, 0
      %p97 = por %p95, %p96
      %p98 = scmp.ne.s32.totalorder %s84, %s85
      %p99 = scmp.eq.s32.totalorder %s14, 3
      %p100 = por %p98, %p99
      %p102 = scmp.ne.s32.totalorder %s85, %s101
      %p103 = scmp.eq.s32.totalorder %s14, 0
      %p104 = por %p102, %p103
      %p105 = scmp.le.s32.totalorder 1, %s8
      %p106 = scmp.lt.s32.totalorder %s8, 5
      %p107 = pnand %p105, %p106
      %p108 = pneg %p107
      // Predicated region
      $region9: #{dupsampling_forward.1} parent=5 // pred_check
        _
      $region10: #{dupsampling_forward.1} parent=5 // pred_check_branch
        %110 = sbr.rel (%p107) target = $region12
      $region11: #{dupsampling_forward.1} parent=5 // pred_region
        %s111 = ssub.s32 %s8, 1
        // Predicated region
        $region13: #{dupsampling_forward.1} parent=11 // pred_check
          %p112 = pneg %p69
        $region14: #{dupsampling_forward.1} parent=11 // pred_check_branch
          %114 = sbr.rel (%p112) target = $region16
        $region15: #{dupsampling_forward.1} parent=11 // pred_region
          _
        $region16: #{dupsampling_forward.1} parent=11 // pred_fallthru
          _
      $region12: #{dupsampling_forward.1} parent=5 // pred_fallthru
        _
      %p115 = scmp.lt.s32.totalorder %s8, 4
      // Predicated region
      $region17: #{dupsampling_forward.1} parent=5 // pred_check
        %p116 = pneg %p115
      $region18: #{dupsampling_forward.1} parent=5 // pred_check_branch
        %118 = sbr.rel (%p116) target = $region20
      $region19: #{dupsampling_forward.1} parent=5 // pred_region
        // Predicated region
        $region21: #{dupsampling_forward.1} parent=19 // pred_check
          %p119 = pneg %p42
        $region22: #{dupsampling_forward.1} parent=19 // pred_check_branch
          %121 = sbr.rel (%p119) target = $region24
        $region23: #{dupsampling_forward.1} parent=19 // pred_region
          %s122 = sand.u32 %s32, 1
          %s123 = sand.u32 %s32, 1
          %s124 = smul.addr %s123, 32
          %s125 = scalar_lea.vmem [#allocation2], %s124
          %s126 = smul.addr %s15, 8
          %s127 = sadd.s32 %s16, %s126
          %s128 = smul.addr %s127, 8
          %s129 = scalar_lea.vmem %s0, %s128
          // Predicated region
          $region25: #{dupsampling_forward.1} parent=23 // pred_check
            _
          $region26: #{dupsampling_forward.1} parent=23 // pred_check_branch
            %131 = sbr.rel (0) target = $region28
          $region27: #{dupsampling_forward.1} parent=23 // pred_region
            // Predicated region
            $region29: #{dupsampling_forward.1} parent=27 // pred_check
              _
            $region30: #{dupsampling_forward.1} parent=27 // pred_check_branch
              %133 = sbr.rel (0) target = $region32
            $region31: #{dupsampling_forward.1} parent=27 // pred_region
              // Predicated region
              $region44: #{dupsampling_forward.1} parent=31 // pred_check
                _
              $region45: #{dupsampling_forward.1} parent=31 // pred_check_branch
                %154 = sbr.rel (0) target = $region47
              $region46: #{dupsampling_forward.1} parent=31 // pred_region
                loop: start=0, step=1, limit=1
                $region48: #{dupsampling_forward.1} parent=46 // loop_pre_header
                  _
                $region49: #{dupsampling_forward.1} parent=46 // loop_header
                  %s156 = sphi 0, %s160
                  %p157 = scmp.ge.s32.totalorder %s156, 1
                  %s161 = sphi %s129, %s129
                  %s162 = sphi %s125, %s125
                $region50: #{dupsampling_forward.1} parent=46 // loop_header_branch
                  %159 = sbr.rel (%p157) target = $region54
                $region51: #{dupsampling_forward.1} parent=46 // loop_body
                  %v163 = vld [vmem:[%s161] sm:$0xff]
                  %164 = vst [vmem:[%s162] sm:$0xff] %v163
                  %v165 = vld [vmem:[%s161 + $0x10] sm:$0xff]
                  %166 = vst [vmem:[%s162 + $0x8] sm:$0xff] %v165
                  %v167 = vld [vmem:[%s161 + $0x20] sm:$0xff]
                  %168 = vst [vmem:[%s162 + $0x10] sm:$0xff] %v167
                  %v169 = vld [vmem:[%s161 + $0x30] sm:$0xff]
                  %170 = vst [vmem:[%s162 + $0x18] sm:$0xff] %v169
                $region52: #{dupsampling_forward.1} parent=46 // loop_footer
                  %s160 = sadd.s32 1, %s156
                $region53: #{dupsampling_forward.1} parent=46 // loop_footer_branch
                  %155 = sbr.rel target = $region49
                $region54: #{dupsampling_forward.1} parent=46 // loop_exit
                  _
              $region47: #{dupsampling_forward.1} parent=31 // pred_fallthru
                _
              // Predicated region
              $region55: #{dupsampling_forward.1} parent=31 // pred_check
                _
              $region56: #{dupsampling_forward.1} parent=31 // pred_check_branch
                %172 = sbr.rel target = $region58
              $region57: #{dupsampling_forward.1} parent=31 // pred_region
                _
              $region58: #{dupsampling_forward.1} parent=31 // pred_fallthru
                _
            $region32: #{dupsampling_forward.1} parent=27 // pred_fallthru
              _
            // Predicated region
            $region33: #{dupsampling_forward.1} parent=27 // pred_check
              _
            $region34: #{dupsampling_forward.1} parent=27 // pred_check_branch
              %135 = sbr.rel target = $region36
            $region35: #{dupsampling_forward.1} parent=27 // pred_region
              loop: start=0, step=1, limit=1
              $region37: #{dupsampling_forward.1} parent=35 // loop_pre_header
                _
              $region38: #{dupsampling_forward.1} parent=35 // loop_header
                %s138 = sphi 0, %s142
                %p139 = scmp.ge.s32.totalorder %s138, 1
                %s143 = sphi %s129, %s129
                %s144 = sphi %s125, %s125
              $region39: #{dupsampling_forward.1} parent=35 // loop_header_branch
                %141 = sbr.rel (%p139) target = $region43
              $region40: #{dupsampling_forward.1} parent=35 // loop_body
                %v145 = vld [vmem:[%s143] sm:$0xff]
                %146 = vst [vmem:[%s144] sm:$0xff] %v145
                %v147 = vld [vmem:[%s143 + $0x10] sm:$0xff]
                %148 = vst [vmem:[%s144 + $0x8] sm:$0xff] %v147
                %v149 = vld [vmem:[%s143 + $0x20] sm:$0xff]
                %150 = vst [vmem:[%s144 + $0x10] sm:$0xff] %v149
                %v151 = vld [vmem:[%s143 + $0x30] sm:$0xff]
                %152 = vst [vmem:[%s144 + $0x18] sm:$0xff] %v151
              $region41: #{dupsampling_forward.1} parent=35 // loop_footer
                %s142 = sadd.s32 1, %s138
              $region42: #{dupsampling_forward.1} parent=35 // loop_footer_branch
                %137 = sbr.rel target = $region38
              $region43: #{dupsampling_forward.1} parent=35 // loop_exit
                _
            $region36: #{dupsampling_forward.1} parent=27 // pred_fallthru
              _
          $region28: #{dupsampling_forward.1} parent=23 // pred_fallthru
            _
          %173 = vnop
        $region24: #{dupsampling_forward.1} parent=19 // pred_fallthru
          _
      $region20: #{dupsampling_forward.1} parent=5 // pred_fallthru
        _
      %p174 = scmp.le.s32.totalorder 1, %s8
      %p175 = scmp.lt.s32.totalorder %s8, 5
      %p176 = pnand %p174, %p175
      %p177 = pneg %p176
      // Predicated region
      $region59: #{dupsampling_forward.1} parent=5 // pred_check
        _
      $region60: #{dupsampling_forward.1} parent=5 // pred_check_branch
        %179 = sbr.rel (%p176) target = $region62
      $region61: #{dupsampling_forward.1} parent=5 // pred_region
        %s180 = ssub.s32 %s8, 1
        %s181 = sand.u32 %s35, 1
        %s182 = sand.u32 %s35, 1
        %s183 = smul.addr %s182, 32
        %s184 = scalar_lea.vmem [#allocation2], %s183
        // Predicated region
        $region63: #{dupsampling_forward.1} parent=61 // pred_check
          %p185 = pneg %p48
        $region64: #{dupsampling_forward.1} parent=61 // pred_check_branch
          %187 = sbr.rel (%p185) target = $region66
        $region65: #{dupsampling_forward.1} parent=61 // pred_region
          _
        $region66: #{dupsampling_forward.1} parent=61 // pred_fallthru
          _
        %s188 = sand.u32 %s35, 1
        %s189 = sand.u32 %s35, 1
        %s190 = smul.addr %s189, 32
        %s191 = scalar_lea.vmem [#allocation2], %s190
        %p192 = pneg %p48
        %p193 = pneg %p45
        %p194 = pneg %p69
        %p195 = pneg %p66
        %p196 = pneg %p97
        %p197 = pneg %p94
        %p198 = scmp.lt.s32.totalorder %s17, 1
        %s199 = scalar_select %p198, %s17, 1
        %p200 = scmp.lt.s32.totalorder %s18, 1
        %s201 = scalar_select %p200, %s18, 1
        %s202 = smul.addr %s199, 2
        %s203 = sadd.s32 %s201, %s202
        %s204 = smul.addr %s203, 8
        %s205 = scalar_lea.vmem %s2, %s204
        %p206 = scmp.lt.s32.totalorder %s17, 1
        %s207 = scalar_select %p206, %s17, 1
        %p208 = scmp.lt.s32.totalorder %s18, 1
        %s209 = scalar_select %p208, %s18, 1
        %s210 = smul.addr %s207, 2
        %s211 = sadd.s32 %s209, %s210
        %s212 = smul.addr %s211, 8
        %s213 = scalar_lea.vmem %s2, %s212
        %v214 = vld [vmem:[%s184] sm:$0xff]
        %v215 = vld [vmem:[%s1] sm:$0xff]
        %v216 = vld [vmem:[%s1 + $0x8] sm:$0xff]
        %s217 = scalar_lea.vmem %s184, 8 [#allocation2]
        %v218 = vld [vmem:[%s217] sm:$0xff]
        %s219 = scalar_lea.vmem %s1, 16
        %v220 = vld [vmem:[%s219] sm:$0xff]
        %v221 = vld [vmem:[%s219 + $0x8] sm:$0xff]
        %vm222 = vcmask 130048
        %v224 = vsel %vm222, %v218, 0
        %226 = vmatprep.subr.mxu0 0.0
        %227 = vmatpush1.msra.mxu0 %v220
        %228 = vmatprep.subr.mxu0 0.0
        %229 = vmatpush1.msra.mxu0 %v221
        %230 = vmatprep.subr.mxu0 0.0
        %231 = vmatpush1.msra.mxu0 0.0
        %232 = vmatprep.subr.mxu0 0.0
        %233 = vmatpush1.msra.mxu0 0.0
        %234 = vmatprep.subr.mxu0 0.0
        %235 = vmatpush1.msra.mxu0 0.0
        %236 = vmatprep.subr.mxu0 0.0
        %237 = vmatpush1.msra.mxu0 0.0
        %238 = vmatprep.subr.mxu0 0.0
        %239 = vmatpush1.msra.mxu0 0.0
        %240 = vmatprep.subr.mxu0 0.0
        %241 = vmatpush1.msra.mxu0 0.0
        %242 = vmatprep.subr.mxu0 0.0
        %243 = vmatpush1.msra.mxu0 0.0
        %244 = vmatprep.subr.mxu0 0.0
        %245 = vmatpush1.msra.mxu0 0.0
        %246 = vmatprep.subr.mxu0 0.0
        %247 = vmatpush1.msra.mxu0 0.0
        %248 = vmatprep.subr.mxu0 0.0
        %249 = vmatpush1.msra.mxu0 0.0
        %250 = vmatprep.subr.mxu0 0.0
        %251 = vmatpush1.msra.mxu0 0.0
        %252 = vmatprep.subr.mxu0 0.0
        %253 = vmatpush1.msra.mxu0 0.0
        %254 = vmatprep.subr.mxu0 0.0
        %255 = vmatpush1.msra.mxu0 0.0
        %256 = vmatprep.subr.mxu0 0.0
        %257 = vmatpush1.msra.mxu0 0.0
        %258 = vmatprep.subr.mxu0 0.0
        %259 = vmatpush1.msra.mxu0 0.0
        %260 = vmatprep.subr.mxu0 0.0
        %261 = vmatpush1.msra.mxu0 0.0
        %262 = vmatprep.subr.mxu0 0.0
        %263 = vmatpush1.msra.mxu0 0.0
        %264 = vmatprep.subr.mxu0 0.0
        %265 = vmatpush1.msra.mxu0 0.0
        %266 = vmatprep.subr.mxu0 0.0
        %267 = vmatpush1.msra.mxu0 0.0
        %268 = vmatprep.subr.mxu0 0.0
        %269 = vmatpush1.msra.mxu0 0.0
        %270 = vmatprep.subr.mxu0 0.0
        %271 = vmatpush1.msra.mxu0 0.0
        %272 = vmatprep.subr.mxu0 0.0
        %273 = vmatpush1.msra.mxu0 0.0
        %274 = vmatprep.subr.mxu0 0.0
        %275 = vmatpush1.msra.mxu0 0.0
        %276 = vmatprep.subr.mxu0 0.0
        %277 = vmatpush1.msra.mxu0 0.0
        %278 = vmatprep.subr.mxu0 0.0
        %279 = vmatpush1.msra.mxu0 0.0
        %280 = vmatprep.subr.mxu0 0.0
        %281 = vmatpush1.msra.mxu0 0.0
        %282 = vmatprep.subr.mxu0 0.0
        %283 = vmatpush1.msra.mxu0 0.0
        %284 = vmatprep.subr.mxu0 0.0
        %285 = vmatpush1.msra.mxu0 0.0
        %286 = vmatprep.subr.mxu0 0.0
        %287 = vmatpush1.msra.mxu0 0.0
        %288 = vmatprep.subr.mxu0 0.0
        %289 = vmatpush1.msra.mxu0 0.0
        %290 = vmatprep.mubr.f32.mxu0 0.0
        %291 = vmatmul.mubr.f32.gmra.mrb[0].mxu0 %v224
        %v292 = vpop.f32.mrb[0].mxu0
        %v293 = vadd.f32 0.0, %v292
        %v294 = vpop.f32.mrb[0].mxu0
        %295 = vdwg.mxu0
        %v297 = vsel %vm222, %v214, 0
        %299 = vmatprep.subr.mxu0 0.0
        %300 = vmatpush1.msra.mxu0 %v215
        %301 = vmatprep.subr.mxu0 0.0
        %302 = vmatpush1.msra.mxu0 %v216
        %303 = vmatprep.subr.mxu0 0.0
        %304 = vmatpush1.msra.mxu0 0.0
        %305 = vmatprep.subr.mxu0 0.0
        %306 = vmatpush1.msra.mxu0 0.0
        %307 = vmatprep.subr.mxu0 0.0
        %308 = vmatpush1.msra.mxu0 0.0
        %309 = vmatprep.subr.mxu0 0.0
        %310 = vmatpush1.msra.mxu0 0.0
        %311 = vmatprep.subr.mxu0 0.0
        %312 = vmatpush1.msra.mxu0 0.0
        %313 = vmatprep.subr.mxu0 0.0
        %314 = vmatpush1.msra.mxu0 0.0
        %315 = vmatprep.subr.mxu0 0.0
        %316 = vmatpush1.msra.mxu0 0.0
        %317 = vmatprep.subr.mxu0 0.0
        %318 = vmatpush1.msra.mxu0 0.0
        %319 = vmatprep.subr.mxu0 0.0
        %320 = vmatpush1.msra.mxu0 0.0
        %321 = vmatprep.subr.mxu0 0.0
        %322 = vmatpush1.msra.mxu0 0.0
        %323 = vmatprep.subr.mxu0 0.0
        %324 = vmatpush1.msra.mxu0 0.0
        %325 = vmatprep.subr.mxu0 0.0
        %326 = vmatpush1.msra.mxu0 0.0
        %327 = vmatprep.subr.mxu0 0.0
        %328 = vmatpush1.msra.mxu0 0.0
        %329 = vmatprep.subr.mxu0 0.0
        %330 = vmatpush1.msra.mxu0 0.0
        %331 = vmatprep.subr.mxu0 0.0
        %332 = vmatpush1.msra.mxu0 0.0
        %333 = vmatprep.subr.mxu0 0.0
        %334 = vmatpush1.msra.mxu0 0.0
        %335 = vmatprep.subr.mxu0 0.0
        %336 = vmatpush1.msra.mxu0 0.0
        %337 = vmatprep.subr.mxu0 0.0
        %338 = vmatpush1.msra.mxu0 0.0
        %339 = vmatprep.subr.mxu0 0.0
        %340 = vmatpush1.msra.mxu0 0.0
        %341 = vmatprep.subr.mxu0 0.0
        %342 = vmatpush1.msra.mxu0 0.0
        %343 = vmatprep.subr.mxu0 0.0
        %344 = vmatpush1.msra.mxu0 0.0
        %345 = vmatprep.subr.mxu0 0.0
        %346 = vmatpush1.msra.mxu0 0.0
        %347 = vmatprep.subr.mxu0 0.0
        %348 = vmatpush1.msra.mxu0 0.0
        %349 = vmatprep.subr.mxu0 0.0
        %350 = vmatpush1.msra.mxu0 0.0
        %351 = vmatprep.subr.mxu0 0.0
        %352 = vmatpush1.msra.mxu0 0.0
        %353 = vmatprep.subr.mxu0 0.0
        %354 = vmatpush1.msra.mxu0 0.0
        %355 = vmatprep.subr.mxu0 0.0
        %356 = vmatpush1.msra.mxu0 0.0
        %357 = vmatprep.subr.mxu0 0.0
        %358 = vmatpush1.msra.mxu0 0.0
        %359 = vmatprep.subr.mxu0 0.0
        %360 = vmatpush1.msra.mxu0 0.0
        %361 = vmatprep.subr.mxu0 0.0
        %362 = vmatpush1.msra.mxu0 0.0
        %363 = vmatprep.mubr.f32.mxu0 0.0
        %364 = vmatmul.mubr.f32.gmra.mrb[0].mxu0 %v297
        %v365 = vpop.f32.mrb[0].mxu0
        %v366 = vadd.f32 %v293, %v365
        %v367 = vpop.f32.mrb[0].mxu0
        %368 = vdwg.mxu0
        %s369 = scalar_lea.vmem %s184, 16 [#allocation2]
        %v370 = vld [vmem:[%s369] sm:$0xff]
        %s371 = scalar_lea.vmem %s1, 32
        %v372 = vld [vmem:[%s371] sm:$0xff]
        %v373 = vld [vmem:[%s371 + $0x8] sm:$0xff]
        %v375 = vsel %vm222, %v370, 0
        %377 = vmatprep.subr.mxu0 0.0
        %378 = vmatpush1.msra.mxu0 %v372
        %379 = vmatprep.subr.mxu0 0.0
        %380 = vmatpush1.msra.mxu0 %v373
        %381 = vmatprep.subr.mxu0 0.0
        %382 = vmatpush1.msra.mxu0 0.0
        %383 = vmatprep.subr.mxu0 0.0
        %384 = vmatpush1.msra.mxu0 0.0
        %385 = vmatprep.subr.mxu0 0.0
        %386 = vmatpush1.msra.mxu0 0.0
        %387 = vmatprep.subr.mxu0 0.0
        %388 = vmatpush1.msra.mxu0 0.0
        %389 = vmatprep.subr.mxu0 0.0
        %390 = vmatpush1.msra.mxu0 0.0
        %391 = vmatprep.subr.mxu0 0.0
        %392 = vmatpush1.msra.mxu0 0.0
        %393 = vmatprep.subr.mxu0 0.0
        %394 = vmatpush1.msra.mxu0 0.0
        %395 = vmatprep.subr.mxu0 0.0
        %396 = vmatpush1.msra.mxu0 0.0
        %397 = vmatprep.subr.mxu0 0.0
        %398 = vmatpush1.msra.mxu0 0.0
        %399 = vmatprep.subr.mxu0 0.0
        %400 = vmatpush1.msra.mxu0 0.0
        %401 = vmatprep.subr.mxu0 0.0
        %402 = vmatpush1.msra.mxu0 0.0
        %403 = vmatprep.subr.mxu0 0.0
        %404 = vmatpush1.msra.mxu0 0.0
        %405 = vmatprep.subr.mxu0 0.0
        %406 = vmatpush1.msra.mxu0 0.0
        %407 = vmatprep.subr.mxu0 0.0
        %408 = vmatpush1.msra.mxu0 0.0
        %409 = vmatprep.subr.mxu0 0.0
        %410 = vmatpush1.msra.mxu0 0.0
        %411 = vmatprep.subr.mxu0 0.0
        %412 = vmatpush1.msra.mxu0 0.0
        %413 = vmatprep.subr.mxu0 0.0
        %414 = vmatpush1.msra.mxu0 0.0
        %415 = vmatprep.subr.mxu0 0.0
        %416 = vmatpush1.msra.mxu0 0.0
        %417 = vmatprep.subr.mxu0 0.0
        %418 = vmatpush1.msra.mxu0 0.0
        %419 = vmatprep.subr.mxu0 0.0
        %420 = vmatpush1.msra.mxu0 0.0
        %421 = vmatprep.subr.mxu0 0.0
        %422 = vmatpush1.msra.mxu0 0.0
        %423 = vmatprep.subr.mxu0 0.0
        %424 = vmatpush1.msra.mxu0 0.0
        %425 = vmatprep.subr.mxu0 0.0
        %426 = vmatpush1.msra.mxu0 0.0
        %427 = vmatprep.subr.mxu0 0.0
        %428 = vmatpush1.msra.mxu0 0.0
        %429 = vmatprep.subr.mxu0 0.0
        %430 = vmatpush1.msra.mxu0 0.0
        %431 = vmatprep.subr.mxu0 0.0
        %432 = vmatpush1.msra.mxu0 0.0
        %433 = vmatprep.subr.mxu0 0.0
        %434 = vmatpush1.msra.mxu0 0.0
        %435 = vmatprep.subr.mxu0 0.0
        %436 = vmatpush1.msra.mxu0 0.0
        %437 = vmatprep.subr.mxu0 0.0
        %438 = vmatpush1.msra.mxu0 0.0
        %439 = vmatprep.subr.mxu0 0.0
        %440 = vmatpush1.msra.mxu0 0.0
        %441 = vmatprep.mubr.f32.mxu0 0.0
        %442 = vmatmul.mubr.f32.gmra.mrb[0].mxu0 %v375
        %v443 = vpop.f32.mrb[0].mxu0
        %v444 = vadd.f32 0.0, %v443
        %v445 = vpop.f32.mrb[0].mxu0
        %446 = vdwg.mxu0
        %v447 = vadd.f32 %v366, %v444
        %s448 = scalar_lea.vmem %s184, 24 [#allocation2]
        %v449 = vld [vmem:[%s448] sm:$0xff]
        %s450 = scalar_lea.vmem %s1, 48
        %v451 = vld [vmem:[%s450] sm:$0xff]
        %v452 = vld [vmem:[%s450 + $0x8] sm:$0xff]
        %v454 = vsel %vm222, %v449, 0
        %456 = vmatprep.subr.mxu0 0.0
        %457 = vmatpush1.msra.mxu0 %v451
        %458 = vmatprep.subr.mxu0 0.0
        %459 = vmatpush1.msra.mxu0 %v452
        %460 = vmatprep.subr.mxu0 0.0
        %461 = vmatpush1.msra.mxu0 0.0
        %462 = vmatprep.subr.mxu0 0.0
        %463 = vmatpush1.msra.mxu0 0.0
        %464 = vmatprep.subr.mxu0 0.0
        %465 = vmatpush1.msra.mxu0 0.0
        %466 = vmatprep.subr.mxu0 0.0
        %467 = vmatpush1.msra.mxu0 0.0
        %468 = vmatprep.subr.mxu0 0.0
        %469 = vmatpush1.msra.mxu0 0.0
        %470 = vmatprep.subr.mxu0 0.0
        %471 = vmatpush1.msra.mxu0 0.0
        %472 = vmatprep.subr.mxu0 0.0
        %473 = vmatpush1.msra.mxu0 0.0
        %474 = vmatprep.subr.mxu0 0.0
        %475 = vmatpush1.msra.mxu0 0.0
        %476 = vmatprep.subr.mxu0 0.0
        %477 = vmatpush1.msra.mxu0 0.0
        %478 = vmatprep.subr.mxu0 0.0
        %479 = vmatpush1.msra.mxu0 0.0
        %480 = vmatprep.subr.mxu0 0.0
        %481 = vmatpush1.msra.mxu0 0.0
        %482 = vmatprep.subr.mxu0 0.0
        %483 = vmatpush1.msra.mxu0 0.0
        %484 = vmatprep.subr.mxu0 0.0
        %485 = vmatpush1.msra.mxu0 0.0
        %486 = vmatprep.subr.mxu0 0.0
        %487 = vmatpush1.msra.mxu0 0.0
        %488 = vmatprep.subr.mxu0 0.0
        %489 = vmatpush1.msra.mxu0 0.0
        %490 = vmatprep.subr.mxu0 0.0
        %491 = vmatpush1.msra.mxu0 0.0
        %492 = vmatprep.subr.mxu0 0.0
        %493 = vmatpush1.msra.mxu0 0.0
        %494 = vmatprep.subr.mxu0 0.0
        %495 = vmatpush1.msra.mxu0 0.0
        %496 = vmatprep.subr.mxu0 0.0
        %497 = vmatpush1.msra.mxu0 0.0
        %498 = vmatprep.subr.mxu0 0.0
        %499 = vmatpush1.msra.mxu0 0.0
        %500 = vmatprep.subr.mxu0 0.0
        %501 = vmatpush1.msra.mxu0 0.0
        %502 = vmatprep.subr.mxu0 0.0
        %503 = vmatpush1.msra.mxu0 0.0
        %504 = vmatprep.subr.mxu0 0.0
        %505 = vmatpush1.msra.mxu0 0.0
        %506 = vmatprep.subr.mxu0 0.0
        %507 = vmatpush1.msra.mxu0 0.0
        %508 = vmatprep.subr.mxu0 0.0
        %509 = vmatpush1.msra.mxu0 0.0
        %510 = vmatprep.subr.mxu0 0.0
        %511 = vmatpush1.msra.mxu0 0.0
        %512 = vmatprep.subr.mxu0 0.0
        %513 = vmatpush1.msra.mxu0 0.0
        %514 = vmatprep.subr.mxu0 0.0
        %515 = vmatpush1.msra.mxu0 0.0
        %516 = vmatprep.subr.mxu0 0.0
        %517 = vmatpush1.msra.mxu0 0.0
        %518 = vmatprep.subr.mxu0 0.0
        %519 = vmatpush1.msra.mxu0 0.0
        %520 = vmatprep.mubr.f32.mxu0 0.0
        %521 = vmatmul.mubr.f32.gmra.mrb[0].mxu0 %v454
        %v522 = vpop.f32.mrb[0].mxu0
        %v523 = vadd.f32 0.0, %v522
        %v524 = vpop.f32.mrb[0].mxu0
        %525 = vdwg.mxu0
        %v526 = vadd.f32 %v447, %v523
        %vm527 = vcmask 523264
        %528 = vst.msk [vmem:[%s213] sm:$0xff] %vm527, %v526
        %p529 = scmp.lt.s32.totalorder %s17, 1
        %s530 = scalar_select %p529, %s17, 1
        %p531 = scmp.lt.s32.totalorder %s18, 1
        %s532 = scalar_select %p531, %s18, 1
        %s533 = smul.addr %s530, 2
        %s534 = sadd.s32 %s532, %s533
        %s535 = smul.addr %s534, 8
        %s536 = scalar_lea.vmem %s2, %s535
        // Predicated region
        $region67: #{dupsampling_forward.1} parent=61 // pred_check
          %p537 = pneg %p94
        $region68: #{dupsampling_forward.1} parent=61 // pred_check_branch
          %539 = sbr.rel (%p537) target = $region70
        $region69: #{dupsampling_forward.1} parent=61 // pred_region
          _
        $region70: #{dupsampling_forward.1} parent=61 // pred_fallthru
          _
      $region62: #{dupsampling_forward.1} parent=5 // pred_fallthru
        _
      %p540 = scmp.le.s32.totalorder 2, %s8
      // Predicated region
      $region71: #{dupsampling_forward.1} parent=5 // pred_check
        %p541 = pneg %p540
      $region72: #{dupsampling_forward.1} parent=5 // pred_check_branch
        %543 = sbr.rel (%p541) target = $region74
      $region73: #{dupsampling_forward.1} parent=5 // pred_region
        %s544 = ssub.s32 %s8, 2
        // Predicated region
        $region75: #{dupsampling_forward.1} parent=73 // pred_check
          %p545 = pneg %p100
        $region76: #{dupsampling_forward.1} parent=73 // pred_check_branch
          %547 = sbr.rel (%p545) target = $region78
        $region77: #{dupsampling_forward.1} parent=73 // pred_region
          %p548 = scmp.lt.s32.totalorder %s19, 1
          %s549 = scalar_select %p548, %s19, 1
          %p550 = scmp.lt.s32.totalorder %s20, 1
          %s551 = scalar_select %p550, %s20, 1
          %s552 = smul.addr %s549, 2
          %s553 = sadd.s32 %s551, %s552
          %s554 = smul.addr %s553, 8
          %s555 = scalar_lea.vmem %s2, %s554
        $region78: #{dupsampling_forward.1} parent=73 // pred_fallthru
          _
      $region74: #{dupsampling_forward.1} parent=5 // pred_fallthru
        _
    $region6: #{dupsampling_forward.1} parent=1 // loop_footer
      %s12 = sadd.s32 1, %s8
    $region7: #{dupsampling_forward.1} parent=1 // loop_footer_branch
      %7 = sbr.rel target = $region3
    $region8: #{dupsampling_forward.1} parent=1 // loop_exit
      _

</llo_original>
